<compile_context>
chip_gen: v6e
topology: v6e:2x2x1
jax: 0.10.0
libtpu: 0.0.40
codegen_flags: <defaults>
</compile_context>

<pallas_src>
import functools

import jax
import jax.numpy as jnp
import numpy as np
from jax.experimental import pallas as pl
from jax.experimental.pallas import tpu as pltpu


def memo_actor_kernel(obs_ref, w1_ref, b1_ref, w2_ref, b2_ref, w3_ref, b3_ref,
                      mu_ref):
    # obs_ref: [TILE_B, S] f32 (streamed batch tile)
    # w*_ref : [in, out]   f32 (pre-transposed, VMEM-resident across the grid)
    # b*_ref : [1, out]    f32 (broadcast over the batch rows)
    x = obs_ref[...]

    # Hidden layer 1: Linear + Tanh
    h1 = jnp.tanh(
        jnp.dot(x, w1_ref[...], preferred_element_type=jnp.float32)
        + b1_ref[...])
    # Hidden layer 2: Linear + Tanh
    h2 = jnp.tanh(
        jnp.dot(h1, w2_ref[...], preferred_element_type=jnp.float32)
        + b2_ref[...])
    # Output layer: Linear (Identity activation) -> mu
    mu = (jnp.dot(h2, w3_ref[...], preferred_element_type=jnp.float32)
          + b3_ref[...])
    mu_ref[...] = mu.astype(mu_ref.dtype)


@functools.partial(jax.jit, static_argnames=("tile_b",))
def memo_actor_forward(obs, params, tile_b=1024):
    """MEMOActor forward pass.

    obs:    [B, state_dim] float32
    params: dict with PyTorch-layout w1..w3 [out, in], b1..b3 [out], log_std [A]
    returns (mu [B, A] float32, std [A] float32) — parameters of Normal(mu, std)
    """
    # Pre-transpose the tiny weights once so the kernel needs no transposes.
    w1_t = params["w1"].T            # [S,  H1]
    w2_t = params["w2"].T            # [H1, H2]
    w3_t = params["w3"].T            # [H2, A]
    b1 = params["b1"].reshape(1, -1)
    b2 = params["b2"].reshape(1, -1)
    b3 = params["b3"].reshape(1, -1)
    log_std = params["log_std"]

    B, S = obs.shape
    H1 = w1_t.shape[1]
    H2 = w2_t.shape[1]
    A = w3_t.shape[1]

    # Batch tiling: one grid axis over batch rows. A single full-array block
    # when the batch fits (no padding, block == array sidesteps the (8,128)
    # rule); otherwise pad to a multiple of tile_b (tile_b should be a
    # multiple of 8).
    if B <= tile_b:
        tb, B_pad, obs_p = B, B, obs
    else:
        tb = tile_b
        B_pad = pl.cdiv(B, tb) * tb
        obs_p = jnp.pad(obs, ((0, B_pad - B), (0, 0))) if B_pad != B else obs
    num_tiles = B_pad // tb

    mu_p = pl.pallas_call(
        memo_actor_kernel,
        out_shape=jax.ShapeDtypeStruct((B_pad, A), jnp.float32),
        grid=(num_tiles,),
        in_specs=[
            pl.BlockSpec((tb, S), lambda i: (i, 0)),    # obs (streamed)
            pl.BlockSpec((S, H1), lambda i: (0, 0)),    # w1^T (resident)
            pl.BlockSpec((1, H1), lambda i: (0, 0)),    # b1
            pl.BlockSpec((H1, H2), lambda i: (0, 0)),   # w2^T
            pl.BlockSpec((1, H2), lambda i: (0, 0)),    # b2
            pl.BlockSpec((H2, A), lambda i: (0, 0)),    # w3^T
            pl.BlockSpec((1, A), lambda i: (0, 0)),     # b3
        ],
        out_specs=pl.BlockSpec((tb, A), lambda i: (i, 0)),
        compiler_params=pltpu.CompilerParams(
            dimension_semantics=("parallel",)),
    )(obs_p, w1_t, b1, w2_t, b2, w3_t, b3)

    mu = mu_p[:B] if B_pad != B else mu_p        # [B, A]
    std = jnp.exp(log_std)                       # batch-independent
    return mu, std


def init_params(key, state_dim, hidden_sizes, action_dim):
    """Parameter init mirroring nn.Linear defaults; PyTorch [out, in] layout."""
    sizes = [state_dim] + list(hidden_sizes) + [action_dim]
    params = {}
    keys = jax.random.split(key, 2 * (len(sizes) - 1))
    for j in range(len(sizes) - 1):
        fan_in, fan_out = sizes[j], sizes[j + 1]
        bound = 1.0 / np.sqrt(fan_in)   # PyTorch default nn.Linear init range
        params[f"w{j + 1}"] = jax.random.uniform(
            keys[2 * j], (fan_out, fan_in), minval=-bound, maxval=bound,
            dtype=jnp.float32)
        params[f"b{j + 1}"] = jax.random.uniform(
            keys[2 * j + 1], (fan_out,), minval=-bound, maxval=bound,
            dtype=jnp.float32)
    # log_std = -0.5 * ones(action_dim), as in the module's __init__
    params["log_std"] = jnp.full((action_dim,), -0.5, dtype=jnp.float32)
    return params


def memo_actor_reference(obs, params):
    """Pure-JAX f32 reference for correctness checking."""
    h1 = jnp.tanh(obs @ params["w1"].T + params["b1"])
    h2 = jnp.tanh(h1 @ params["w2"].T + params["b2"])
    mu = h2 @ params["w3"].T + params["b3"]
    std = jnp.exp(params["log_std"])
    return mu, std


if __name__ == "__main__":
    # Shapes consistent with the module: obs [B, state_dim], hidden_size=[32,32],
    # action_dim=4. B=200 with tile_b=128 exercises batch padding and a
    # multi-step grid.
    B, STATE_DIM, HIDDEN, ACTION_DIM = 200, 16, [32, 32], 4

    key = jax.random.PRNGKey(0)
    k_obs, k_param = jax.random.split(key)
    obs = jax.random.normal(k_obs, (B, STATE_DIM), dtype=jnp.float32)
    params = init_params(k_param, STATE_DIM, HIDDEN, ACTION_DIM)

    mu, std = memo_actor_forward(obs, params, tile_b=128)
    mu, std = jax.block_until_ready(mu), jax.block_until_ready(std)

    mu_ref, std_ref = memo_actor_reference(obs, params)
    # Kernel and reference may use different MXU accumulation orders/precisions;
    # tolerance sized accordingly (both paths are f32-activation).
    np.testing.assert_allclose(np.asarray(mu), np.asarray(mu_ref),
                               rtol=1e-2, atol=1e-2)
    np.testing.assert_allclose(np.asarray(std), np.asarray(std_ref),
                               rtol=1e-6, atol=1e-6)

    print("KERNEL_OK")
</pallas_src>

<mosaic_0001>
module attributes {stable_mosaic.version = 11 : i64} {
  func.func @memo_actor_kernel(%arg0: i32, %arg1: memref<128x16xf32, #tpu.memory_space<vmem>>, %arg2: memref<16x32xf32, #tpu.memory_space<vmem>>, %arg3: memref<1x32xf32, #tpu.memory_space<vmem>>, %arg4: memref<32x32xf32, #tpu.memory_space<vmem>>, %arg5: memref<1x32xf32, #tpu.memory_space<vmem>>, %arg6: memref<32x4xf32, #tpu.memory_space<vmem>>, %arg7: memref<1x4xf32, #tpu.memory_space<vmem>>, %arg8: memref<128x4xf32, #tpu.memory_space<vmem>>) attributes {dimension_semantics = [#tpu.dimension_semantics<parallel>], iteration_bounds = array<i64: 2>, scalar_prefetch = 0 : i64, scratch_operands = 0 : i64, tpu.core_type = #tpu.core_type<tc>, window_params = [{transform_indices = @transform_0, window_bounds = array<i64: 128, 16>}, {pipeline_mode = #tpu.pipeline_mode<synchronous>, transform_indices = @transform_1, window_bounds = array<i64: 16, 32>}, {pipeline_mode = #tpu.pipeline_mode<synchronous>, transform_indices = @transform_2, window_bounds = array<i64: 1, 32>}, {pipeline_mode = #tpu.pipeline_mode<synchronous>, transform_indices = @transform_3, window_bounds = array<i64: 32, 32>}, {pipeline_mode = #tpu.pipeline_mode<synchronous>, transform_indices = @transform_4, window_bounds = array<i64: 1, 32>}, {pipeline_mode = #tpu.pipeline_mode<synchronous>, transform_indices = @transform_5, window_bounds = array<i64: 32, 4>}, {pipeline_mode = #tpu.pipeline_mode<synchronous>, transform_indices = @transform_6, window_bounds = array<i64: 1, 4>}, {transform_indices = @transform_7, window_bounds = array<i64: 128, 4>}]} {
    %c0 = arith.constant 0 : index
    %c0_0 = arith.constant 0 : index
    %0 = vector.load %arg1[%c0, %c0_0] : memref<128x16xf32, #tpu.memory_space<vmem>>, vector<128x16xf32>
    %c0_1 = arith.constant 0 : index
    %c0_2 = arith.constant 0 : index
    %1 = vector.load %arg2[%c0_1, %c0_2] : memref<16x32xf32, #tpu.memory_space<vmem>>, vector<16x32xf32>
    %cst = arith.constant dense<0.000000e+00> : vector<128x32xf32>
    %2 = tpu.matmul %0, %1, %cst {dimension_numbers = #tpu.dot_dimension_numbers<[1], [0], [0], [1], [0, 0, 1, 1], [], []>} : vector<128x16xf32>, vector<16x32xf32>, vector<128x32xf32> -> vector<128x32xf32>
    %c0_3 = arith.constant 0 : index
    %c0_4 = arith.constant 0 : index
    %3 = vector.load %arg3[%c0_3, %c0_4] : memref<1x32xf32, #tpu.memory_space<vmem>>, vector<1x32xf32>
    %4 = vector.broadcast %3 : vector<1x32xf32> to vector<128x32xf32>
    %5 = arith.addf %2, %4 : vector<128x32xf32>
    %6 = math.tanh %5 : vector<128x32xf32>
    %c0_5 = arith.constant 0 : index
    %c0_6 = arith.constant 0 : index
    %7 = vector.load %arg4[%c0_5, %c0_6] : memref<32x32xf32, #tpu.memory_space<vmem>>, vector<32x32xf32>
    %cst_7 = arith.constant dense<0.000000e+00> : vector<128x32xf32>
    %8 = tpu.matmul %6, %7, %cst_7 {dimension_numbers = #tpu.dot_dimension_numbers<[1], [0], [0], [1], [0, 0, 1, 1], [], []>} : vector<128x32xf32>, vector<32x32xf32>, vector<128x32xf32> -> vector<128x32xf32>
    %c0_8 = arith.constant 0 : index
    %c0_9 = arith.constant 0 : index
    %9 = vector.load %arg5[%c0_8, %c0_9] : memref<1x32xf32, #tpu.memory_space<vmem>>, vector<1x32xf32>
    %10 = vector.broadcast %9 : vector<1x32xf32> to vector<128x32xf32>
    %11 = arith.addf %8, %10 : vector<128x32xf32>
    %12 = math.tanh %11 : vector<128x32xf32>
    %c0_10 = arith.constant 0 : index
    %c0_11 = arith.constant 0 : index
    %13 = vector.load %arg6[%c0_10, %c0_11] : memref<32x4xf32, #tpu.memory_space<vmem>>, vector<32x4xf32>
    %cst_12 = arith.constant dense<0.000000e+00> : vector<128x4xf32>
    %14 = tpu.matmul %12, %13, %cst_12 {dimension_numbers = #tpu.dot_dimension_numbers<[1], [0], [0], [1], [0, 0, 1, 1], [], []>} : vector<128x32xf32>, vector<32x4xf32>, vector<128x4xf32> -> vector<128x4xf32>
    %c0_13 = arith.constant 0 : index
    %c0_14 = arith.constant 0 : index
    %15 = vector.load %arg7[%c0_13, %c0_14] : memref<1x4xf32, #tpu.memory_space<vmem>>, vector<1x4xf32>
    %16 = vector.broadcast %15 : vector<1x4xf32> to vector<128x4xf32>
    %17 = arith.addf %14, %16 : vector<128x4xf32>
    %c0_15 = arith.constant 0 : index
    %c0_16 = arith.constant 0 : index
    %18 = vector.load %arg8[%c0_15, %c0_16] : memref<128x4xf32, #tpu.memory_space<vmem>>, vector<128x4xf32>
    tpu.vector_store %arg8[%c0_15, %c0_16], %17 {strides = array<i32>} : memref<128x4xf32, #tpu.memory_space<vmem>>, vector<128x4xf32>,
    return
  }
  func.func @transform_0(%arg0: i32) -> (i32, i32) {
    %c0_i32 = arith.constant 0 : i32
    %c0_i32_0 = arith.constant 0 : i32
    return %arg0, %c0_i32 : i32, i32
  }
  func.func @transform_1(%arg0: i32) -> (i32, i32) {
    %c0_i32 = arith.constant 0 : i32
    %c0_i32_0 = arith.constant 0 : i32
    %c0_i32_1 = arith.constant 0 : i32
    return %c0_i32, %c0_i32_0 : i32, i32
  }
  func.func @transform_2(%arg0: i32) -> (i32, i32) {
    %c0_i32 = arith.constant 0 : i32
    %c0_i32_0 = arith.constant 0 : i32
    %c0_i32_1 = arith.constant 0 : i32
    return %c0_i32, %c0_i32_0 : i32, i32
  }
  func.func @transform_3(%arg0: i32) -> (i32, i32) {
    %c0_i32 = arith.constant 0 : i32
    %c0_i32_0 = arith.constant 0 : i32
    %c0_i32_1 = arith.constant 0 : i32
    return %c0_i32, %c0_i32_0 : i32, i32
  }
  func.func @transform_4(%arg0: i32) -> (i32, i32) {
    %c0_i32 = arith.constant 0 : i32
    %c0_i32_0 = arith.constant 0 : i32
    %c0_i32_1 = arith.constant 0 : i32
    return %c0_i32, %c0_i32_0 : i32, i32
  }
  func.func @transform_5(%arg0: i32) -> (i32, i32) {
    %c0_i32 = arith.constant 0 : i32
    %c0_i32_0 = arith.constant 0 : i32
    %c0_i32_1 = arith.constant 0 : i32
    return %c0_i32, %c0_i32_0 : i32, i32
  }
  func.func @transform_6(%arg0: i32) -> (i32, i32) {
    %c0_i32 = arith.constant 0 : i32
    %c0_i32_0 = arith.constant 0 : i32
    %c0_i32_1 = arith.constant 0 : i32
    return %c0_i32, %c0_i32_0 : i32, i32
  }
  func.func @transform_7(%arg0: i32) -> (i32, i32) {
    %c0_i32 = arith.constant 0 : i32
    %c0_i32_0 = arith.constant 0 : i32
    return %arg0, %c0_i32 : i32, i32
  }
}

</mosaic_0001>

<llo_original>
// kernel: memo_actor_forward.1
$region0: #{memo_actor_forward.1}
  #allocation0 [shape = 'u32[]', space=smem, size = 0x4, offset = 0x4, fixed_abs, tag = 'smem constant byte address 0x4 - core index']
  #allocation1 [shape = 'u32[144,128]{1,0:T(1,128)}', space=vmem, size = 0x12000, scoped, tag = 'internal scratch']
  %s0 = inlined_call_operand.vmem [shape: f32[256,16], index: 0, kind: input, shape index: {}]
  %s1 = inlined_call_operand.vmem [shape: f32[16,32], index: 1, kind: input, shape index: {}]
  %s2 = inlined_call_operand.vmem [shape: f32[1,32], index: 2, kind: input, shape index: {}]
  %s3 = inlined_call_operand.vmem [shape: f32[32,32], index: 3, kind: input, shape index: {}]
  %s4 = inlined_call_operand.vmem [shape: f32[1,32], index: 4, kind: input, shape index: {}]
  %s5 = inlined_call_operand.vmem [shape: f32[32,4], index: 5, kind: input, shape index: {}]
  %s6 = inlined_call_operand.vmem [shape: f32[1,4], index: 6, kind: input, shape index: {}]
  %s7 = inlined_call_operand.vmem [shape: f32[256,4], index: 7, kind: output, shape index: {}]
  %s8 = sld [smem:[#allocation0]]
  $region61: #{memo_actor_forward.1} parent=0
    _
  %s10 = ssub.s32 1, %s8
  %s11 = scalar_select 0, %s10, %s8
  loop: start=0, step=1, limit=4
  $region2: #{memo_actor_forward.1} parent=0 // loop_pre_header
    _
  $region3: #{memo_actor_forward.1} parent=0 // loop_header
    %s13 = sphi 0, %s17
    %p14 = scmp.ge.s32.totalorder %s13, 4
    %s23 = sphi 0, %s25
    %s26 = sphi 0, %s23
    %s27 = sphi 0, %s26
    %s43 = sphi 0, %s27
    %s47 = sphi 0, %s47
    %s49 = sphi 0, %s47
    %s50 = sphi 0, %s49
    %s64 = sphi 0, %s50
    %s68 = sphi 0, %s68
    %s70 = sphi 0, %s68
    %s71 = sphi 0, %s70
    %s85 = sphi 0, %s71
    %s89 = sphi 0, %s89
    %s91 = sphi 0, %s89
    %s92 = sphi 0, %s91
    %s106 = sphi 0, %s92
    %s110 = sphi 0, %s110
    %s112 = sphi 0, %s110
    %s113 = sphi 0, %s112
    %s127 = sphi 0, %s113
    %s131 = sphi 0, %s131
    %s133 = sphi 0, %s131
    %s134 = sphi 0, %s133
    %s148 = sphi 0, %s134
    %s152 = sphi 0, %s152
    %s154 = sphi 0, %s152
    %s155 = sphi 0, %s154
    %s169 = sphi 0, %s155
    %s175 = sphi 0, %s177
    %s178 = sphi 0, %s175
    %s179 = sphi 0, %s178
    %s195 = sphi 0, %s179
  $region4: #{memo_actor_forward.1} parent=0 // loop_header_branch
    %16 = sbr.rel (%p14) target = $region8
  $region5: #{memo_actor_forward.1} parent=0 // loop_body
    %s18 = ssub.s32 %s13, 1
    %s19 = ssub.s32 %s13, 2
    %s20 = sadd.s32 %s13, 1
    %s21 = ssub.s32 %s13, %s20
    %p22 = scmp.eq.s32.totalorder %s21, 0
    %s24 = sadd.s32 %s23, 1
    %s25 = scalar_select %p22, %s23, %s24
    %p28 = pneg %p22
    %p29 = scmp.eq.s32.totalorder %s13, 1
    %p30 = por %p28, %p29
    %p31 = scmp.ne.s32.totalorder %s23, %s26
    %p32 = scmp.eq.s32.totalorder %s13, 0
    %p33 = por %p31, %p32
    %p34 = scmp.ne.s32.totalorder %s23, %s26
    %p35 = scmp.eq.s32.totalorder %s18, 1
    %p36 = por %p34, %p35
    %p37 = scmp.ne.s32.totalorder %s26, %s27
    %p38 = scmp.eq.s32.totalorder %s18, 0
    %p39 = por %p37, %p38
    %p40 = scmp.ne.s32.totalorder %s26, %s27
    %p41 = scmp.eq.s32.totalorder %s19, 1
    %p42 = por %p40, %p41
    %p44 = scmp.ne.s32.totalorder %s27, %s43
    %p45 = scmp.eq.s32.totalorder %s19, 0
    %p46 = por %p44, %p45
    %s48 = sadd.s32 %s47, 1
    %p51 = scmp.eq.s32.totalorder %s13, 1
    %p52 = scmp.ne.s32.totalorder %s47, %s49
    %p53 = scmp.eq.s32.totalorder %s13, 0
    %p54 = por %p52, %p53
    %p55 = scmp.ne.s32.totalorder %s47, %s49
    %p56 = scmp.eq.s32.totalorder %s18, 1
    %p57 = por %p55, %p56
    %p58 = scmp.ne.s32.totalorder %s49, %s50
    %p59 = scmp.eq.s32.totalorder %s18, 0
    %p60 = por %p58, %p59
    %p61 = scmp.ne.s32.totalorder %s49, %s50
    %p62 = scmp.eq.s32.totalorder %s19, 1
    %p63 = por %p61, %p62
    %p65 = scmp.ne.s32.totalorder %s50, %s64
    %p66 = scmp.eq.s32.totalorder %s19, 0
    %p67 = por %p65, %p66
    %s69 = sadd.s32 %s68, 1
    %p72 = scmp.eq.s32.totalorder %s13, 1
    %p73 = scmp.ne.s32.totalorder %s68, %s70
    %p74 = scmp.eq.s32.totalorder %s13, 0
    %p75 = por %p73, %p74
    %p76 = scmp.ne.s32.totalorder %s68, %s70
    %p77 = scmp.eq.s32.totalorder %s18, 1
    %p78 = por %p76, %p77
    %p79 = scmp.ne.s32.totalorder %s70, %s71
    %p80 = scmp.eq.s32.totalorder %s18, 0
    %p81 = por %p79, %p80
    %p82 = scmp.ne.s32.totalorder %s70, %s71
    %p83 = scmp.eq.s32.totalorder %s19, 1
    %p84 = por %p82, %p83
    %p86 = scmp.ne.s32.totalorder %s71, %s85
    %p87 = scmp.eq.s32.totalorder %s19, 0
    %p88 = por %p86, %p87
    %s90 = sadd.s32 %s89, 1
    %p93 = scmp.eq.s32.totalorder %s13, 1
    %p94 = scmp.ne.s32.totalorder %s89, %s91
    %p95 = scmp.eq.s32.totalorder %s13, 0
    %p96 = por %p94, %p95
    %p97 = scmp.ne.s32.totalorder %s89, %s91
    %p98 = scmp.eq.s32.totalorder %s18, 1
    %p99 = por %p97, %p98
    %p100 = scmp.ne.s32.totalorder %s91, %s92
    %p101 = scmp.eq.s32.totalorder %s18, 0
    %p102 = por %p100, %p101
    %p103 = scmp.ne.s32.totalorder %s91, %s92
    %p104 = scmp.eq.s32.totalorder %s19, 1
    %p105 = por %p103, %p104
    %p107 = scmp.ne.s32.totalorder %s92, %s106
    %p108 = scmp.eq.s32.totalorder %s19, 0
    %p109 = por %p107, %p108
    %s111 = sadd.s32 %s110, 1
    %p114 = scmp.eq.s32.totalorder %s13, 1
    %p115 = scmp.ne.s32.totalorder %s110, %s112
    %p116 = scmp.eq.s32.totalorder %s13, 0
    %p117 = por %p115, %p116
    %p118 = scmp.ne.s32.totalorder %s110, %s112
    %p119 = scmp.eq.s32.totalorder %s18, 1
    %p120 = por %p118, %p119
    %p121 = scmp.ne.s32.totalorder %s112, %s113
    %p122 = scmp.eq.s32.totalorder %s18, 0
    %p123 = por %p121, %p122
    %p124 = scmp.ne.s32.totalorder %s112, %s113
    %p125 = scmp.eq.s32.totalorder %s19, 1
    %p126 = por %p124, %p125
    %p128 = scmp.ne.s32.totalorder %s113, %s127
    %p129 = scmp.eq.s32.totalorder %s19, 0
    %p130 = por %p128, %p129
    %s132 = sadd.s32 %s131, 1
    %p135 = scmp.eq.s32.totalorder %s13, 1
    %p136 = scmp.ne.s32.totalorder %s131, %s133
    %p137 = scmp.eq.s32.totalorder %s13, 0
    %p138 = por %p136, %p137
    %p139 = scmp.ne.s32.totalorder %s131, %s133
    %p140 = scmp.eq.s32.totalorder %s18, 1
    %p141 = por %p139, %p140
    %p142 = scmp.ne.s32.totalorder %s133, %s134
    %p143 = scmp.eq.s32.totalorder %s18, 0
    %p144 = por %p142, %p143
    %p145 = scmp.ne.s32.totalorder %s133, %s134
    %p146 = scmp.eq.s32.totalorder %s19, 1
    %p147 = por %p145, %p146
    %p149 = scmp.ne.s32.totalorder %s134, %s148
    %p150 = scmp.eq.s32.totalorder %s19, 0
    %p151 = por %p149, %p150
    %s153 = sadd.s32 %s152, 1
    %p156 = scmp.eq.s32.totalorder %s13, 1
    %p157 = scmp.ne.s32.totalorder %s152, %s154
    %p158 = scmp.eq.s32.totalorder %s13, 0
    %p159 = por %p157, %p158
    %p160 = scmp.ne.s32.totalorder %s152, %s154
    %p161 = scmp.eq.s32.totalorder %s18, 1
    %p162 = por %p160, %p161
    %p163 = scmp.ne.s32.totalorder %s154, %s155
    %p164 = scmp.eq.s32.totalorder %s18, 0
    %p165 = por %p163, %p164
    %p166 = scmp.ne.s32.totalorder %s154, %s155
    %p167 = scmp.eq.s32.totalorder %s19, 1
    %p168 = por %p166, %p167
    %p170 = scmp.ne.s32.totalorder %s155, %s169
    %p171 = scmp.eq.s32.totalorder %s19, 0
    %p172 = por %p170, %p171
    %s173 = ssub.s32 %s13, %s20
    %p174 = scmp.eq.s32.totalorder %s173, 0
    %s176 = sadd.s32 %s175, 1
    %s177 = scalar_select %p174, %s175, %s176
    %p180 = pneg %p174
    %p181 = scmp.eq.s32.totalorder %s13, 1
    %p182 = por %p180, %p181
    %p183 = scmp.ne.s32.totalorder %s175, %s178
    %p184 = scmp.eq.s32.totalorder %s13, 0
    %p185 = por %p183, %p184
    %p186 = scmp.ne.s32.totalorder %s175, %s178
    %p187 = scmp.eq.s32.totalorder %s18, 1
    %p188 = por %p186, %p187
    %p189 = scmp.ne.s32.totalorder %s178, %s179
    %p190 = scmp.eq.s32.totalorder %s18, 0
    %p191 = por %p189, %p190
    %p192 = scmp.ne.s32.totalorder %s178, %s179
    %p193 = scmp.eq.s32.totalorder %s19, 1
    %p194 = por %p192, %p193
    %p196 = scmp.ne.s32.totalorder %s179, %s195
    %p197 = scmp.eq.s32.totalorder %s19, 0
    %p198 = por %p196, %p197
    %p199 = scmp.le.s32.totalorder 1, %s13
    %p200 = scmp.lt.s32.totalorder %s13, 3
    %p201 = pnand %p199, %p200
    %p202 = pneg %p201
    // Predicated region
    $region9: #{memo_actor_forward.1} parent=5 // pred_check
      _
    $region10: #{memo_actor_forward.1} parent=5 // pred_check_branch
      %204 = sbr.rel (%p201) target = $region12
    $region11: #{memo_actor_forward.1} parent=5 // pred_region
      %s205 = ssub.s32 %s13, 1
      // Predicated region
      $region13: #{memo_actor_forward.1} parent=11 // pred_check
        %p206 = pneg %p60
      $region14: #{memo_actor_forward.1} parent=11 // pred_check_branch
        %208 = sbr.rel (%p206) target = $region16
      $region15: #{memo_actor_forward.1} parent=11 // pred_region
        _
      $region16: #{memo_actor_forward.1} parent=11 // pred_fallthru
        _
      // Predicated region
      $region17: #{memo_actor_forward.1} parent=11 // pred_check
        %p209 = pneg %p81
      $region18: #{memo_actor_forward.1} parent=11 // pred_check_branch
        %211 = sbr.rel (%p209) target = $region20
      $region19: #{memo_actor_forward.1} parent=11 // pred_region
        _
      $region20: #{memo_actor_forward.1} parent=11 // pred_fallthru
        _
      // Predicated region
      $region21: #{memo_actor_forward.1} parent=11 // pred_check
        %p212 = pneg %p102
      $region22: #{memo_actor_forward.1} parent=11 // pred_check_branch
        %214 = sbr.rel (%p212) target = $region24
      $region23: #{memo_actor_forward.1} parent=11 // pred_region
        _
      $region24: #{memo_actor_forward.1} parent=11 // pred_fallthru
        _
      // Predicated region
      $region25: #{memo_actor_forward.1} parent=11 // pred_check
        %p215 = pneg %p123
      $region26: #{memo_actor_forward.1} parent=11 // pred_check_branch
        %217 = sbr.rel (%p215) target = $region28
      $region27: #{memo_actor_forward.1} parent=11 // pred_region
        _
      $region28: #{memo_actor_forward.1} parent=11 // pred_fallthru
        _
      // Predicated region
      $region29: #{memo_actor_forward.1} parent=11 // pred_check
        %p218 = pneg %p144
      $region30: #{memo_actor_forward.1} parent=11 // pred_check_branch
        %220 = sbr.rel (%p218) target = $region32
      $region31: #{memo_actor_forward.1} parent=11 // pred_region
        _
      $region32: #{memo_actor_forward.1} parent=11 // pred_fallthru
        _
      // Predicated region
      $region33: #{memo_actor_forward.1} parent=11 // pred_check
        %p221 = pneg %p165
      $region34: #{memo_actor_forward.1} parent=11 // pred_check_branch
        %223 = sbr.rel (%p221) target = $region36
      $region35: #{memo_actor_forward.1} parent=11 // pred_region
        _
      $region36: #{memo_actor_forward.1} parent=11 // pred_fallthru
        _
    $region12: #{memo_actor_forward.1} parent=5 // pred_fallthru
      _
    %p224 = scmp.lt.s32.totalorder %s13, 2
    // Predicated region
    $region37: #{memo_actor_forward.1} parent=5 // pred_check
      %p225 = pneg %p224
    $region38: #{memo_actor_forward.1} parent=5 // pred_check_branch
      %227 = sbr.rel (%p225) target = $region40
    $region39: #{memo_actor_forward.1} parent=5 // pred_region
      // Predicated region
      $region41: #{memo_actor_forward.1} parent=39 // pred_check
        %p228 = pneg %p33
      $region42: #{memo_actor_forward.1} parent=39 // pred_check_branch
        %230 = sbr.rel (%p228) target = $region44
      $region43: #{memo_actor_forward.1} parent=39 // pred_region
        %s231 = smul.u32 16, %s13
        %p232 = scmp.lt.s32.totalorder %s231, 31
        %s233 = scalar_select %p232, %s231, 31
        %s234 = smul.addr %s233, 8
        %s235 = scalar_lea.vmem %s0, %s234
        %s236 = smul.u32 16, %s13
      $region44: #{memo_actor_forward.1} parent=39 // pred_fallthru
        _
    $region40: #{memo_actor_forward.1} parent=5 // pred_fallthru
      _
    %p237 = scmp.le.s32.totalorder 1, %s13
    %p238 = scmp.lt.s32.totalorder %s13, 3
    %p239 = pnand %p237, %p238
    %p240 = pneg %p239
    // Predicated region
    $region45: #{memo_actor_forward.1} parent=5 // pred_check
      _
    $region46: #{memo_actor_forward.1} parent=5 // pred_check_branch
      %242 = sbr.rel (%p239) target = $region48
    $region47: #{memo_actor_forward.1} parent=5 // pred_region
      %s243 = ssub.s32 %s13, 1
      %s244 = smul.u32 16, %s18
      %p245 = scmp.lt.s32.totalorder %s244, 31
      %s246 = scalar_select %p245, %s244, 31
      %s247 = smul.addr %s246, 8
      %s248 = scalar_lea.vmem %s0, %s247
      %p249 = pneg %p39
      %p250 = pneg %p36
      %p251 = pneg %p60
      %p252 = pneg %p57
      %p253 = pneg %p81
      %p254 = pneg %p78
      %p255 = pneg %p102
      %p256 = pneg %p99
      %p257 = pneg %p123
      %p258 = pneg %p120
      %p259 = pneg %p144
      %p260 = pneg %p141
      %p261 = pneg %p165
      %p262 = pneg %p162
      %p263 = pneg %p191
      %p264 = pneg %p188
      %s265 = smul.u32 16, %s18
      %p266 = scmp.lt.s32.totalorder %s265, 31
      %s267 = scalar_select %p266, %s265, 31
      %s268 = smul.addr %s267, 8
      %s269 = scalar_lea.vmem %s7, %s268
      %s270 = smul.u32 16, %s18
      %p271 = scmp.lt.s32.totalorder %s270, 31
      %s272 = scalar_select %p271, %s270, 31
      %s273 = smul.addr %s272, 8
      %s274 = scalar_lea.vmem %s0, %s273
      %s275 = smul.u32 16, %s18
      %s276 = smul.u32 16, %s18
      %p277 = scmp.lt.s32.totalorder %s276, 31
      %s278 = scalar_select %p277, %s276, 31
      %s279 = smul.addr %s278, 8
      %s280 = scalar_lea.vmem %s7, %s279
      %s281 = smul.u32 16, %s18
      %v282 = vld [vmem:[%s274] sm:$0xff]
      %v283 = vld [vmem:[%s274 + $0x8] sm:$0xff]
      %v284 = vld [vmem:[%s274 + $0x10] sm:$0xff]
      %v285 = vld [vmem:[%s274 + $0x18] sm:$0xff]
      %v286 = vld [vmem:[%s274 + $0x20] sm:$0xff]
      %v287 = vld [vmem:[%s274 + $0x28] sm:$0xff]
      %v288 = vld [vmem:[%s274 + $0x30] sm:$0xff]
      %v289 = vld [vmem:[%s274 + $0x38] sm:$0xff]
      %v290 = vld [vmem:[%s274 + $0x40] sm:$0xff]
      %v291 = vld [vmem:[%s274 + $0x48] sm:$0xff]
      %v292 = vld [vmem:[%s274 + $0x50] sm:$0xff]
      %v293 = vld [vmem:[%s274 + $0x58] sm:$0xff]
      %v294 = vld [vmem:[%s274 + $0x60] sm:$0xff]
      %v295 = vld [vmem:[%s274 + $0x68] sm:$0xff]
      %v296 = vld [vmem:[%s274 + $0x70] sm:$0xff]
      %v297 = vld [vmem:[%s274 + $0x78] sm:$0xff]
      %v298 = vld [vmem:[%s1] sm:$0xff]
      %v299 = vld [vmem:[%s1 + $0x8] sm:$0xff]
      %v300 = vld [vmem:[%s2] sm:$0x1]
      %v302 = vlaneseq
      %v303 = vshrl.u32 %v302, 7
      %v304 = vsub.s32 0, %v303
      %v305 = vrot.slane %v300, %v304
      %vm307 = vcmask 130048
      %v309 = vsel %vm307, %v282, 0
      %v312 = vsel %vm307, %v283, 0
      %v315 = vsel %vm307, %v284, 0
      %v318 = vsel %vm307, %v285, 0
      %v321 = vsel %vm307, %v286, 0
      %v324 = vsel %vm307, %v287, 0
      %v327 = vsel %vm307, %v288, 0
      %v330 = vsel %vm307, %v289, 0
      %v333 = vsel %vm307, %v290, 0
      %v336 = vsel %vm307, %v291, 0
      %v339 = vsel %vm307, %v292, 0
      %v342 = vsel %vm307, %v293, 0
      %v345 = vsel %vm307, %v294, 0
      %v348 = vsel %vm307, %v295, 0
      %v351 = vsel %vm307, %v296, 0
      %v354 = vsel %vm307, %v297, 0
      %356 = vmatprep.subr.mxu0 0.0
      %357 = vmatpush1.msra.mxu0 0.0
      %358 = vmatprep.subr.mxu0 0.0
      %359 = vmatpush1.msra.mxu0 0.0
      %360 = vmatprep.subr.mxu0 0.0
      %361 = vmatpush1.msra.mxu0 0.0
      %362 = vmatprep.subr.mxu0 0.0
      %363 = vmatpush1.msra.mxu0 0.0
      %364 = vmatprep.subr.mxu0 0.0
      %365 = vmatpush1.msra.mxu0 0.0
      %366 = vmatprep.subr.mxu0 0.0
      %367 = vmatpush1.msra.mxu0 0.0
      %368 = vmatprep.subr.mxu0 0.0
      %369 = vmatpush1.msra.mxu0 0.0
      %370 = vmatprep.subr.mxu0 0.0
      %371 = vmatpush1.msra.mxu0 0.0
      %372 = vmatprep.subr.mxu0 0.0
      %373 = vmatpush1.msra.mxu0 0.0
      %374 = vmatprep.subr.mxu0 0.0
      %375 = vmatpush1.msra.mxu0 0.0
      %376 = vmatprep.subr.mxu0 0.0
      %377 = vmatpush1.msra.mxu0 0.0
      %378 = vmatprep.subr.mxu0 0.0
      %379 = vmatpush1.msra.mxu0 0.0
      %380 = vmatprep.subr.mxu0 0.0
      %381 = vmatpush1.msra.mxu0 0.0
      %382 = vmatprep.subr.mxu0 0.0
      %383 = vmatpush1.msra.mxu0 0.0
      %384 = vmatprep.subr.mxu0 0.0
      %385 = vmatpush1.msra.mxu0 %v299
      %386 = vmatprep.subr.mxu0 0.0
      %387 = vmatpush1.msra.mxu0 %v298
      %388 = vmatprep.subr.mxu0 0.0
      %389 = vmatpush2.msra.mxu0 0.0
      %390 = vmatprep.subr.mxu0 0.0
      %391 = vmatpush2.msra.mxu0 0.0
      %392 = vmatprep.subr.mxu0 0.0
      %393 = vmatpush2.msra.mxu0 0.0
      %394 = vmatprep.subr.mxu0 0.0
      %395 = vmatpush2.msra.mxu0 0.0
      %396 = vmatprep.subr.mxu0 0.0
      %397 = vmatpush2.msra.mxu0 0.0
      %398 = vmatprep.subr.mxu0 0.0
      %399 = vmatpush2.msra.mxu0 0.0
      %400 = vmatprep.subr.mxu0 0.0
      %401 = vmatpush2.msra.mxu0 0.0
      %402 = vmatprep.subr.mxu0 0.0
      %403 = vmatpush2.msra.mxu0 0.0
      %404 = vmatprep.subr.mxu0 0.0
      %405 = vmatpush2.msra.mxu0 0.0
      %406 = vmatprep.subr.mxu0 0.0
      %407 = vmatpush2.msra.mxu0 0.0
      %408 = vmatprep.subr.mxu0 0.0
      %409 = vmatpush2.msra.mxu0 0.0
      %410 = vmatprep.subr.mxu0 0.0
      %411 = vmatpush2.msra.mxu0 0.0
      %412 = vmatprep.subr.mxu0 0.0
      %413 = vmatpush2.msra.mxu0 0.0
      %414 = vmatprep.subr.mxu0 0.0
      %415 = vmatpush2.msra.mxu0 0.0
      %416 = vmatprep.subr.mxu0 0.0
      %417 = vmatpush2.msra.mxu0 0.0
      %418 = vmatprep.subr.mxu0 0.0
      %419 = vmatpush2.msra.mxu0 0.0
      %420 = vmatprep.mubr.f32.mxu0 0.0
      %421 = vmatmul.mubr.f32.gmra.mxu0 %v309
      %v422 = vpop.f32.mrf.mxu0
      %v423 = vadd.f32 %v305, %v422
      %v424 = vpop.f32.mrf.mxu0
      %425 = vmatprep.mubr.f32.mxu0 0.0
      %426 = vmatmul.mubr.f32.gmra.mxu0 %v312
      %v427 = vpop.f32.mrf.mxu0
      %v428 = vadd.f32 %v305, %v427
      %v429 = vpop.f32.mrf.mxu0
      %430 = vmatprep.mubr.f32.mxu0 0.0
      %431 = vmatmul.mubr.f32.gmra.mxu0 %v315
      %v432 = vpop.f32.mrf.mxu0
      %v433 = vadd.f32 %v305, %v432
      %v434 = vpop.f32.mrf.mxu0
      %435 = vmatprep.mubr.f32.mxu0 0.0
      %436 = vmatmul.mubr.f32.gmra.mxu0 %v318
      %v437 = vpop.f32.mrf.mxu0
      %v438 = vadd.f32 %v305, %v437
      %v439 = vpop.f32.mrf.mxu0
      %440 = vmatprep.mubr.f32.mxu0 0.0
      %441 = vmatmul.mubr.f32.gmra.mxu0 %v321
      %v442 = vpop.f32.mrf.mxu0
      %v443 = vadd.f32 %v305, %v442
      %v444 = vpop.f32.mrf.mxu0
      %445 = vmatprep.mubr.f32.mxu0 0.0
      %446 = vmatmul.mubr.f32.gmra.mxu0 %v324
      %v447 = vpop.f32.mrf.mxu0
      %v448 = vadd.f32 %v305, %v447
      %v449 = vpop.f32.mrf.mxu0
      %450 = vmatprep.mubr.f32.mxu0 0.0
      %451 = vmatmul.mubr.f32.gmra.mxu0 %v327
      %v452 = vpop.f32.mrf.mxu0
      %v453 = vadd.f32 %v305, %v452
      %v454 = vpop.f32.mrf.mxu0
      %455 = vmatprep.mubr.f32.mxu0 0.0
      %456 = vmatmul.mubr.f32.gmra.mxu0 %v330
      %v457 = vpop.f32.mrf.mxu0
      %v458 = vadd.f32 %v305, %v457
      %v459 = vpop.f32.mrf.mxu0
      %460 = vmatprep.mubr.f32.mxu0 0.0
      %461 = vmatmul.mubr.f32.gmra.mxu0 %v333
      %v462 = vpop.f32.mrf.mxu0
      %v463 = vadd.f32 %v305, %v462
      %v464 = vpop.f32.mrf.mxu0
      %465 = vmatprep.mubr.f32.mxu0 0.0
      %466 = vmatmul.mubr.f32.gmra.mxu0 %v336
      %v467 = vpop.f32.mrf.mxu0
      %v468 = vadd.f32 %v305, %v467
      %v469 = vpop.f32.mrf.mxu0
      %470 = vmatprep.mubr.f32.mxu0 0.0
      %471 = vmatmul.mubr.f32.gmra.mxu0 %v339
      %v472 = vpop.f32.mrf.mxu0
      %v473 = vadd.f32 %v305, %v472
      %v474 = vpop.f32.mrf.mxu0
      %475 = vmatprep.mubr.f32.mxu0 0.0
      %476 = vmatmul.mubr.f32.gmra.mxu0 %v342
      %v477 = vpop.f32.mrf.mxu0
      %v478 = vadd.f32 %v305, %v477
      %v479 = vpop.f32.mrf.mxu0
      %480 = vmatprep.mubr.f32.mxu0 0.0
      %481 = vmatmul.mubr.f32.gmra.mxu0 %v345
      %v482 = vpop.f32.mrf.mxu0
      %v483 = vadd.f32 %v305, %v482
      %v484 = vpop.f32.mrf.mxu0
      %485 = vmatprep.mubr.f32.mxu0 0.0
      %486 = vmatmul.mubr.f32.gmra.mxu0 %v348
      %v487 = vpop.f32.mrf.mxu0
      %v488 = vadd.f32 %v305, %v487
      %v489 = vpop.f32.mrf.mxu0
      %490 = vmatprep.mubr.f32.mxu0 0.0
      %491 = vmatmul.mubr.f32.gmra.mxu0 %v351
      %v492 = vpop.f32.mrf.mxu0
      %v493 = vadd.f32 %v305, %v492
      %v494 = vpop.f32.mrf.mxu0
      %495 = vmatprep.mubr.f32.mxu0 0.0
      %496 = vmatmul.mubr.f32.gmra.mxu0 %v354
      %v497 = vpop.f32.mrf.mxu0
      %v498 = vadd.f32 %v305, %v497
      %v499 = vpop.f32.mrf.mxu0
      %500 = vdwg.mxu0
      %v501 = vtanh.pop %v423
      %v502 = vtanh.pop %v428
      %v503 = vtanh.pop %v433
      %v504 = vtanh.pop %v438
      %v505 = vtanh.pop %v443
      %v506 = vtanh.pop %v448
      %v507 = vtanh.pop %v453
      %v508 = vtanh.pop %v458
      %v509 = vtanh.pop %v463
      %v510 = vtanh.pop %v468
      %v511 = vtanh.pop %v473
      %v512 = vtanh.pop %v478
      %v513 = vtanh.pop %v483
      %v514 = vtanh.pop %v488
      %v515 = vtanh.pop %v493
      %v516 = vtanh.pop %v498
      %v517 = vld [vmem:[%s3] sm:$0xff]
      %v518 = vld [vmem:[%s3 + $0x8] sm:$0xff]
      %v519 = vld [vmem:[%s3 + $0x10] sm:$0xff]
      %v520 = vld [vmem:[%s3 + $0x18] sm:$0xff]
      %v521 = vld [vmem:[%s4] sm:$0x1]
      %v523 = vlaneseq
      %v524 = vshrl.u32 %v523, 7
      %v525 = vsub.s32 0, %v524
      %v526 = vrot.slane %v521, %v525
      %vm528 = vcmask 261120
      %v530 = vsel %vm528, %v501, 0
      %v533 = vsel %vm528, %v502, 0
      %v536 = vsel %vm528, %v503, 0
      %v539 = vsel %vm528, %v504, 0
      %v542 = vsel %vm528, %v505, 0
      %v545 = vsel %vm528, %v506, 0
      %v548 = vsel %vm528, %v507, 0
      %v551 = vsel %vm528, %v508, 0
      %v554 = vsel %vm528, %v509, 0
      %v557 = vsel %vm528, %v510, 0
      %v560 = vsel %vm528, %v511, 0
      %v563 = vsel %vm528, %v512, 0
      %v566 = vsel %vm528, %v513, 0
      %v569 = vsel %vm528, %v514, 0
      %v572 = vsel %vm528, %v515, 0
      %v575 = vsel %vm528, %v516, 0
      %577 = vmatprep.subr.mxu0 0.0
      %578 = vmatpush1.msra.mxu0 0.0
      %579 = vmatprep.subr.mxu0 0.0
      %580 = vmatpush1.msra.mxu0 0.0
      %581 = vmatprep.subr.mxu0 0.0
      %582 = vmatpush1.msra.mxu0 0.0
      %583 = vmatprep.subr.mxu0 0.0
      %584 = vmatpush1.msra.mxu0 0.0
      %585 = vmatprep.subr.mxu0 0.0
      %586 = vmatpush1.msra.mxu0 0.0
      %587 = vmatprep.subr.mxu0 0.0
      %588 = vmatpush1.msra.mxu0 0.0
      %589 = vmatprep.subr.mxu0 0.0
      %590 = vmatpush1.msra.mxu0 0.0
      %591 = vmatprep.subr.mxu0 0.0
      %592 = vmatpush1.msra.mxu0 0.0
      %593 = vmatprep.subr.mxu0 0.0
      %594 = vmatpush1.msra.mxu0 0.0
      %595 = vmatprep.subr.mxu0 0.0
      %596 = vmatpush1.msra.mxu0 0.0
      %597 = vmatprep.subr.mxu0 0.0
      %598 = vmatpush1.msra.mxu0 0.0
      %599 = vmatprep.subr.mxu0 0.0
      %600 = vmatpush1.msra.mxu0 0.0
      %601 = vmatprep.subr.mxu0 0.0
      %602 = vmatpush1.msra.mxu0 %v520
      %603 = vmatprep.subr.mxu0 0.0
      %604 = vmatpush1.msra.mxu0 %v519
      %605 = vmatprep.subr.mxu0 0.0
      %606 = vmatpush1.msra.mxu0 %v518
      %607 = vmatprep.subr.mxu0 0.0
      %608 = vmatpush1.msra.mxu0 %v517
      %609 = vmatprep.subr.mxu0 0.0
      %610 = vmatpush2.msra.mxu0 0.0
      %611 = vmatprep.subr.mxu0 0.0
      %612 = vmatpush2.msra.mxu0 0.0
      %613 = vmatprep.subr.mxu0 0.0
      %614 = vmatpush2.msra.mxu0 0.0
      %615 = vmatprep.subr.mxu0 0.0
      %616 = vmatpush2.msra.mxu0 0.0
      %617 = vmatprep.subr.mxu0 0.0
      %618 = vmatpush2.msra.mxu0 0.0
      %619 = vmatprep.subr.mxu0 0.0
      %620 = vmatpush2.msra.mxu0 0.0
      %621 = vmatprep.subr.mxu0 0.0
      %622 = vmatpush2.msra.mxu0 0.0
      %623 = vmatprep.subr.mxu0 0.0
      %624 = vmatpush2.msra.mxu0 0.0
      %625 = vmatprep.subr.mxu0 0.0
      %626 = vmatpush2.msra.mxu0 0.0
      %627 = vmatprep.subr.mxu0 0.0
      %628 = vmatpush2.msra.mxu0 0.0
      %629 = vmatprep.subr.mxu0 0.0
      %630 = vmatpush2.msra.mxu0 0.0
      %631 = vmatprep.subr.mxu0 0.0
      %632 = vmatpush2.msra.mxu0 0.0
      %633 = vmatprep.subr.mxu0 0.0
      %634 = vmatpush2.msra.mxu0 0.0
      %635 = vmatprep.subr.mxu0 0.0
      %636 = vmatpush2.msra.mxu0 0.0
      %637 = vmatprep.subr.mxu0 0.0
      %638 = vmatpush2.msra.mxu0 0.0
      %639 = vmatprep.subr.mxu0 0.0
      %640 = vmatpush2.msra.mxu0 0.0
      %641 = vmatprep.mubr.f32.mxu0 0.0
      %642 = vmatmul.mubr.f32.gmra.mxu0 %v530
      %v643 = vpop.f32.mrf.mxu0
      %v644 = vadd.f32 %v526, %v643
      %v645 = vpop.f32.mrf.mxu0
      %646 = vmatprep.mubr.f32.mxu0 0.0
      %647 = vmatmul.mubr.f32.gmra.mxu0 %v533
      %v648 = vpop.f32.mrf.mxu0
      %v649 = vadd.f32 %v526, %v648
      %v650 = vpop.f32.mrf.mxu0
      %651 = vmatprep.mubr.f32.mxu0 0.0
      %652 = vmatmul.mubr.f32.gmra.mxu0 %v536
      %v653 = vpop.f32.mrf.mxu0
      %v654 = vadd.f32 %v526, %v653
      %v655 = vpop.f32.mrf.mxu0
      %656 = vmatprep.mubr.f32.mxu0 0.0
      %657 = vmatmul.mubr.f32.gmra.mxu0 %v539
      %v658 = vpop.f32.mrf.mxu0
      %v659 = vadd.f32 %v526, %v658
      %v660 = vpop.f32.mrf.mxu0
      %661 = vmatprep.mubr.f32.mxu0 0.0
      %662 = vmatmul.mubr.f32.gmra.mxu0 %v542
      %v663 = vpop.f32.mrf.mxu0
      %v664 = vadd.f32 %v526, %v663
      %v665 = vpop.f32.mrf.mxu0
      %666 = vmatprep.mubr.f32.mxu0 0.0
      %667 = vmatmul.mubr.f32.gmra.mxu0 %v545
      %v668 = vpop.f32.mrf.mxu0
      %v669 = vadd.f32 %v526, %v668
      %v670 = vpop.f32.mrf.mxu0
      %671 = vmatprep.mubr.f32.mxu0 0.0
      %672 = vmatmul.mubr.f32.gmra.mxu0 %v548
      %v673 = vpop.f32.mrf.mxu0
      %v674 = vadd.f32 %v526, %v673
      %v675 = vpop.f32.mrf.mxu0
      %676 = vmatprep.mubr.f32.mxu0 0.0
      %677 = vmatmul.mubr.f32.gmra.mxu0 %v551
      %v678 = vpop.f32.mrf.mxu0
      %v679 = vadd.f32 %v526, %v678
      %v680 = vpop.f32.mrf.mxu0
      %681 = vmatprep.mubr.f32.mxu0 0.0
      %682 = vmatmul.mubr.f32.gmra.mxu0 %v554
      %v683 = vpop.f32.mrf.mxu0
      %v684 = vadd.f32 %v526, %v683
      %v685 = vpop.f32.mrf.mxu0
      %686 = vmatprep.mubr.f32.mxu0 0.0
      %687 = vmatmul.mubr.f32.gmra.mxu0 %v557
      %v688 = vpop.f32.mrf.mxu0
      %v689 = vadd.f32 %v526, %v688
      %v690 = vpop.f32.mrf.mxu0
      %691 = vmatprep.mubr.f32.mxu0 0.0
      %692 = vmatmul.mubr.f32.gmra.mxu0 %v560
      %v693 = vpop.f32.mrf.mxu0
      %v694 = vadd.f32 %v526, %v693
      %v695 = vpop.f32.mrf.mxu0
      %696 = vmatprep.mubr.f32.mxu0 0.0
      %697 = vmatmul.mubr.f32.gmra.mxu0 %v563
      %v698 = vpop.f32.mrf.mxu0
      %v699 = vadd.f32 %v526, %v698
      %v700 = vpop.f32.mrf.mxu0
      %701 = vmatprep.mubr.f32.mxu0 0.0
      %702 = vmatmul.mubr.f32.gmra.mxu0 %v566
      %v703 = vpop.f32.mrf.mxu0
      %v704 = vadd.f32 %v526, %v703
      %v705 = vpop.f32.mrf.mxu0
      %706 = vmatprep.mubr.f32.mxu0 0.0
      %707 = vmatmul.mubr.f32.gmra.mxu0 %v569
      %v708 = vpop.f32.mrf.mxu0
      %v709 = vadd.f32 %v526, %v708
      %v710 = vpop.f32.mrf.mxu0
      %711 = vmatprep.mubr.f32.mxu0 0.0
      %712 = vmatmul.mubr.f32.gmra.mxu0 %v572
      %v713 = vpop.f32.mrf.mxu0
      %v714 = vadd.f32 %v526, %v713
      %v715 = vpop.f32.mrf.mxu0
      %716 = vmatprep.mubr.f32.mxu0 0.0
      %717 = vmatmul.mubr.f32.gmra.mxu0 %v575
      %v718 = vpop.f32.mrf.mxu0
      %v719 = vadd.f32 %v526, %v718
      %v720 = vpop.f32.mrf.mxu0
      %721 = vdwg.mxu0
      %v722 = vtanh.pop %v644
      %v723 = vtanh.pop %v649
      %v724 = vtanh.pop %v654
      %v725 = vtanh.pop %v659
      %v726 = vtanh.pop %v664
      %v727 = vtanh.pop %v669
      %v728 = vtanh.pop %v674
      %v729 = vtanh.pop %v679
      %v730 = vtanh.pop %v684
      %v731 = vtanh.pop %v689
      %v732 = vtanh.pop %v694
      %v733 = vtanh.pop %v699
      %v734 = vtanh.pop %v704
      %v735 = vtanh.pop %v709
      %v736 = vtanh.pop %v714
      %v737 = vtanh.pop %v719
      %v738 = vld [vmem:[%s5] sm:$0xff]
      %v739 = vld [vmem:[%s5 + $0x8] sm:$0xff]
      %v740 = vld [vmem:[%s5 + $0x10] sm:$0xff]
      %v741 = vld [vmem:[%s5 + $0x18] sm:$0xff]
      %v742 = vld [vmem:[%s6] sm:$0x1]
      %v744 = vlaneseq
      %v745 = vshrl.u32 %v744, 7
      %v746 = vsub.s32 0, %v745
      %v747 = vrot.slane %v742, %v746
      %v750 = vsel %vm528, %v722, 0
      %v753 = vsel %vm528, %v723, 0
      %v756 = vsel %vm528, %v724, 0
      %v759 = vsel %vm528, %v725, 0
      %v762 = vsel %vm528, %v726, 0
      %v765 = vsel %vm528, %v727, 0
      %v768 = vsel %vm528, %v728, 0
      %v771 = vsel %vm528, %v729, 0
      %v774 = vsel %vm528, %v730, 0
      %v777 = vsel %vm528, %v731, 0
      %v780 = vsel %vm528, %v732, 0
      %v783 = vsel %vm528, %v733, 0
      %v786 = vsel %vm528, %v734, 0
      %v789 = vsel %vm528, %v735, 0
      %v792 = vsel %vm528, %v736, 0
      %v795 = vsel %vm528, %v737, 0
      %797 = vmatprep.subr.mxu0 0.0
      %798 = vmatpush1.msra.mxu0 0.0
      %799 = vmatprep.subr.mxu0 0.0
      %800 = vmatpush1.msra.mxu0 0.0
      %801 = vmatprep.subr.mxu0 0.0
      %802 = vmatpush1.msra.mxu0 0.0
      %803 = vmatprep.subr.mxu0 0.0
      %804 = vmatpush1.msra.mxu0 0.0
      %805 = vmatprep.subr.mxu0 0.0
      %806 = vmatpush1.msra.mxu0 0.0
      %807 = vmatprep.subr.mxu0 0.0
      %808 = vmatpush1.msra.mxu0 0.0
      %809 = vmatprep.subr.mxu0 0.0
      %810 = vmatpush1.msra.mxu0 0.0
      %811 = vmatprep.subr.mxu0 0.0
      %812 = vmatpush1.msra.mxu0 0.0
      %813 = vmatprep.subr.mxu0 0.0
      %814 = vmatpush1.msra.mxu0 0.0
      %815 = vmatprep.subr.mxu0 0.0
      %816 = vmatpush1.msra.mxu0 0.0
      %817 = vmatprep.subr.mxu0 0.0
      %818 = vmatpush1.msra.mxu0 0.0
      %819 = vmatprep.subr.mxu0 0.0
      %820 = vmatpush1.msra.mxu0 0.0
      %821 = vmatprep.subr.mxu0 0.0
      %822 = vmatpush1.msra.mxu0 %v741
      %823 = vmatprep.subr.mxu0 0.0
      %824 = vmatpush1.msra.mxu0 %v740
      %825 = vmatprep.subr.mxu0 0.0
      %826 = vmatpush1.msra.mxu0 %v739
      %827 = vmatprep.subr.mxu0 0.0
      %828 = vmatpush1.msra.mxu0 %v738
      %829 = vmatprep.subr.mxu0 0.0
      %830 = vmatpush2.msra.mxu0 0.0
      %831 = vmatprep.subr.mxu0 0.0
      %832 = vmatpush2.msra.mxu0 0.0
      %833 = vmatprep.subr.mxu0 0.0
      %834 = vmatpush2.msra.mxu0 0.0
      %835 = vmatprep.subr.mxu0 0.0
      %836 = vmatpush2.msra.mxu0 0.0
      %837 = vmatprep.subr.mxu0 0.0
      %838 = vmatpush2.msra.mxu0 0.0
      %839 = vmatprep.subr.mxu0 0.0
      %840 = vmatpush2.msra.mxu0 0.0
      %841 = vmatprep.subr.mxu0 0.0
      %842 = vmatpush2.msra.mxu0 0.0
      %843 = vmatprep.subr.mxu0 0.0
      %844 = vmatpush2.msra.mxu0 0.0
      %845 = vmatprep.subr.mxu0 0.0
      %846 = vmatpush2.msra.mxu0 0.0
      %847 = vmatprep.subr.mxu0 0.0
      %848 = vmatpush2.msra.mxu0 0.0
      %849 = vmatprep.subr.mxu0 0.0
      %850 = vmatpush2.msra.mxu0 0.0
      %851 = vmatprep.subr.mxu0 0.0
      %852 = vmatpush2.msra.mxu0 0.0
      %853 = vmatprep.subr.mxu0 0.0
      %854 = vmatpush2.msra.mxu0 0.0
      %855 = vmatprep.subr.mxu0 0.0
      %856 = vmatpush2.msra.mxu0 0.0
      %857 = vmatprep.subr.mxu0 0.0
      %858 = vmatpush2.msra.mxu0 0.0
      %859 = vmatprep.subr.mxu0 0.0
      %860 = vmatpush2.msra.mxu0 0.0
      %861 = vmatprep.mubr.f32.mxu0 0.0
      %862 = vmatmul.mubr.f32.gmra.mxu0 %v750
      %v863 = vpop.f32.mrf.mxu0
      %v864 = vadd.f32 %v747, %v863
      %v865 = vpop.f32.mrf.mxu0
      %866 = vmatprep.mubr.f32.mxu0 0.0
      %867 = vmatmul.mubr.f32.gmra.mxu0 %v753
      %v868 = vpop.f32.mrf.mxu0
      %v869 = vadd.f32 %v747, %v868
      %v870 = vpop.f32.mrf.mxu0
      %871 = vmatprep.mubr.f32.mxu0 0.0
      %872 = vmatmul.mubr.f32.gmra.mxu0 %v756
      %v873 = vpop.f32.mrf.mxu0
      %v874 = vadd.f32 %v747, %v873
      %v875 = vpop.f32.mrf.mxu0
      %876 = vmatprep.mubr.f32.mxu0 0.0
      %877 = vmatmul.mubr.f32.gmra.mxu0 %v759
      %v878 = vpop.f32.mrf.mxu0
      %v879 = vadd.f32 %v747, %v878
      %v880 = vpop.f32.mrf.mxu0
      %881 = vmatprep.mubr.f32.mxu0 0.0
      %882 = vmatmul.mubr.f32.gmra.mxu0 %v762
      %v883 = vpop.f32.mrf.mxu0
      %v884 = vadd.f32 %v747, %v883
      %v885 = vpop.f32.mrf.mxu0
      %886 = vmatprep.mubr.f32.mxu0 0.0
      %887 = vmatmul.mubr.f32.gmra.mxu0 %v765
      %v888 = vpop.f32.mrf.mxu0
      %v889 = vadd.f32 %v747, %v888
      %v890 = vpop.f32.mrf.mxu0
      %891 = vmatprep.mubr.f32.mxu0 0.0
      %892 = vmatmul.mubr.f32.gmra.mxu0 %v768
      %v893 = vpop.f32.mrf.mxu0
      %v894 = vadd.f32 %v747, %v893
      %v895 = vpop.f32.mrf.mxu0
      %896 = vmatprep.mubr.f32.mxu0 0.0
      %897 = vmatmul.mubr.f32.gmra.mxu0 %v771
      %v898 = vpop.f32.mrf.mxu0
      %v899 = vadd.f32 %v747, %v898
      %v900 = vpop.f32.mrf.mxu0
      %901 = vmatprep.mubr.f32.mxu0 0.0
      %902 = vmatmul.mubr.f32.gmra.mxu0 %v774
      %v903 = vpop.f32.mrf.mxu0
      %v904 = vadd.f32 %v747, %v903
      %v905 = vpop.f32.mrf.mxu0
      %906 = vmatprep.mubr.f32.mxu0 0.0
      %907 = vmatmul.mubr.f32.gmra.mxu0 %v777
      %v908 = vpop.f32.mrf.mxu0
      %v909 = vadd.f32 %v747, %v908
      %v910 = vpop.f32.mrf.mxu0
      %911 = vmatprep.mubr.f32.mxu0 0.0
      %912 = vmatmul.mubr.f32.gmra.mxu0 %v780
      %v913 = vpop.f32.mrf.mxu0
      %v914 = vadd.f32 %v747, %v913
      %v915 = vpop.f32.mrf.mxu0
      %916 = vmatprep.mubr.f32.mxu0 0.0
      %917 = vmatmul.mubr.f32.gmra.mxu0 %v783
      %v918 = vpop.f32.mrf.mxu0
      %v919 = vadd.f32 %v747, %v918
      %v920 = vpop.f32.mrf.mxu0
      %921 = vmatprep.mubr.f32.mxu0 0.0
      %922 = vmatmul.mubr.f32.gmra.mxu0 %v786
      %v923 = vpop.f32.mrf.mxu0
      %v924 = vadd.f32 %v747, %v923
      %v925 = vpop.f32.mrf.mxu0
      %926 = vmatprep.mubr.f32.mxu0 0.0
      %927 = vmatmul.mubr.f32.gmra.mxu0 %v789
      %v928 = vpop.f32.mrf.mxu0
      %v929 = vadd.f32 %v747, %v928
      %v930 = vpop.f32.mrf.mxu0
      %931 = vmatprep.mubr.f32.mxu0 0.0
      %932 = vmatmul.mubr.f32.gmra.mxu0 %v792
      %v933 = vpop.f32.mrf.mxu0
      %v934 = vadd.f32 %v747, %v933
      %v935 = vpop.f32.mrf.mxu0
      %936 = vmatprep.mubr.f32.mxu0 0.0
      %937 = vmatmul.mubr.f32.gmra.mxu0 %v795
      %v938 = vpop.f32.mrf.mxu0
      %v939 = vadd.f32 %v747, %v938
      %v940 = vpop.f32.mrf.mxu0
      %941 = vdwg.mxu0
      %vm942 = vcmask 31744
      %943 = vst.msk [vmem:[%s280] sm:$0xff] %vm942, %v864
      %944 = vst.msk [vmem:[%s280 + $0x8] sm:$0xff] %vm942, %v869
      %945 = vst.msk [vmem:[%s280 + $0x10] sm:$0xff] %vm942, %v874
      %946 = vst.msk [vmem:[%s280 + $0x18] sm:$0xff] %vm942, %v879
      %947 = vst.msk [vmem:[%s280 + $0x20] sm:$0xff] %vm942, %v884
      %948 = vst.msk [vmem:[%s280 + $0x28] sm:$0xff] %vm942, %v889
      %949 = vst.msk [vmem:[%s280 + $0x30] sm:$0xff] %vm942, %v894
      %950 = vst.msk [vmem:[%s280 + $0x38] sm:$0xff] %vm942, %v899
      %951 = vst.msk [vmem:[%s280 + $0x40] sm:$0xff] %vm942, %v904
      %952 = vst.msk [vmem:[%s280 + $0x48] sm:$0xff] %vm942, %v909
      %953 = vst.msk [vmem:[%s280 + $0x50] sm:$0xff] %vm942, %v914
      %954 = vst.msk [vmem:[%s280 + $0x58] sm:$0xff] %vm942, %v919
      %955 = vst.msk [vmem:[%s280 + $0x60] sm:$0xff] %vm942, %v924
      %956 = vst.msk [vmem:[%s280 + $0x68] sm:$0xff] %vm942, %v929
      %957 = vst.msk [vmem:[%s280 + $0x70] sm:$0xff] %vm942, %v934
      %958 = vst.msk [vmem:[%s280 + $0x78] sm:$0xff] %vm942, %v939
      %s959 = smul.u32 16, %s18
      %p960 = scmp.lt.s32.totalorder %s959, 31
      %s961 = scalar_select %p960, %s959, 31
      %s962 = smul.addr %s961, 8
      %s963 = scalar_lea.vmem %s7, %s962
      // Predicated region
      $region49: #{memo_actor_forward.1} parent=47 // pred_check
        %p964 = pneg %p188
      $region50: #{memo_actor_forward.1} parent=47 // pred_check_branch
        %966 = sbr.rel (%p964) target = $region52
      $region51: #{memo_actor_forward.1} parent=47 // pred_region
        %s967 = smul.u32 16, %s18
      $region52: #{memo_actor_forward.1} parent=47 // pred_fallthru
        _
    $region48: #{memo_actor_forward.1} parent=5 // pred_fallthru
      _
    %p968 = scmp.le.s32.totalorder 2, %s13
    // Predicated region
    $region53: #{memo_actor_forward.1} parent=5 // pred_check
      %p969 = pneg %p968
    $region54: #{memo_actor_forward.1} parent=5 // pred_check_branch
      %971 = sbr.rel (%p969) target = $region56
    $region55: #{memo_actor_forward.1} parent=5 // pred_region
      %s972 = ssub.s32 %s13, 2
      // Predicated region
      $region57: #{memo_actor_forward.1} parent=55 // pred_check
        %p973 = pneg %p194
      $region58: #{memo_actor_forward.1} parent=55 // pred_check_branch
        %975 = sbr.rel (%p973) target = $region60
      $region59: #{memo_actor_forward.1} parent=55 // pred_region
        %s976 = smul.u32 16, %s19
        %p977 = scmp.lt.s32.totalorder %s976, 31
        %s978 = scalar_select %p977, %s976, 31
        %s979 = smul.addr %s978, 8
        %s980 = scalar_lea.vmem %s7, %s979
      $region60: #{memo_actor_forward.1} parent=55 // pred_fallthru
        _
    $region56: #{memo_actor_forward.1} parent=5 // pred_fallthru
      _
  $region6: #{memo_actor_forward.1} parent=0 // loop_footer
    %s17 = sadd.s32 1, %s13
  $region7: #{memo_actor_forward.1} parent=0 // loop_footer_branch
    %12 = sbr.rel target = $region3
  $region8: #{memo_actor_forward.1} parent=0 // loop_exit
    _

</llo_original>
